<compile_context>
chip_gen: v5e
topology: v5e:2x2
jax: 0.10.0
libtpu: 0.0.40
codegen_flags: <defaults>
</compile_context>

<pallas_src>
import jax
import jax.numpy as jnp
from jax.experimental import pallas as pl
from jax.experimental.pallas import tpu as pltpu


N_IN = 4                      # Net.fc input features
N_OUT = 3                     # Net.fc2 output features
LANE = 128                    # TPU lane width
SUBLANE = 8                   # f32 sublanes per vreg
FOLD = SUBLANE                # batch rows folded onto sublanes (dense slabs)
MAX_TILE_LANES = 16384        # folded lanes per grid step
                              #   -> 8*16384 = 128K batch rows, ~3.5 MB HBM/step
VMEM_LIMIT_BYTES = 32 * 1024 * 1024   # explicit: v5e default scoped is 16 MiB
MIN_PALLAS_BATCH = 4096       # below this, plain XLA wins (launch/relayout)


def _round_up(n, m):
    return ((n + m - 1) // m) * m


def fused_affine_kernel(w_ref, b_ref, x_ref, o_ref):
    """y = W_f @ x + b_f on dense, sublane-folded batch slabs (VPU only).

    w_ref : [3, 4] f32 in SMEM   fused weight  (W_f = w2 @ w1)
    b_ref : [3]    f32 in SMEM   fused bias    (b_f = w2 @ b1 + b2)
    x_ref : [4, 8, TB] f32 VMEM  x_ref[f] is an (8, TB) slab holding 8*TB
                                 batch rows of input feature f (batch spread
                                 over sublanes *and* lanes -> fully dense vregs)
    o_ref : [3, 8, TB] f32 VMEM  o_ref[o] is the matching output slab
    """
    xs = [x_ref[f] for f in range(N_IN)]          # load each input slab once
    for o in range(N_OUT):
        acc = xs[0] * w_ref[o, 0] + b_ref[o]
        for f in range(1, N_IN):
            acc = acc + xs[f] * w_ref[o, f]
        o_ref[o] = acc                            # full-vreg, unmasked stores


def _fused_affine_pallas(x_fm, w_f, b_f):
    """x_fm: [4, B] f32 (feature-major). Returns [3, B] f32."""
    B = x_fm.shape[1]

    # Pad the batch only to the fold granularity (8 * 128 = 1024 rows), then
    # pick the largest tile <= MAX_TILE_LANES that evenly covers it so unlucky
    # batch sizes don't blow up the padded HBM traffic.
    b_pad = _round_up(B, FOLD * LANE)
    lanes = b_pad // FOLD
    g = pl.cdiv(lanes, MAX_TILE_LANES)            # grid steps
    tb = _round_up(pl.cdiv(lanes, g), LANE)       # folded lanes per step
    lanes = g * tb
    b_pad = FOLD * lanes

    x_p = jnp.pad(x_fm.astype(jnp.float32), ((0, 0), (0, b_pad - B)))
    # Free row-major reshape: [4, b_pad] -> [4, 8, lanes]; batch row b lands at
    # (sublane b // lanes, lane b % lanes) of its feature's slab.
    x_fold = x_p.reshape(N_IN, FOLD, lanes)

    out_fold = pl.pallas_call(
        fused_affine_kernel,
        out_shape=jax.ShapeDtypeStruct((N_OUT, FOLD, lanes), jnp.float32),
        grid_spec=pltpu.PrefetchScalarGridSpec(
            num_scalar_prefetch=0,
            grid=(g,),
            in_specs=[
                pl.BlockSpec(memory_space=pltpu.MemorySpace.SMEM),  # W_f [3,4]
                pl.BlockSpec(memory_space=pltpu.MemorySpace.SMEM),  # b_f [3]
                pl.BlockSpec((N_IN, FOLD, tb), lambda i: (0, 0, i)),
            ],
            out_specs=pl.BlockSpec((N_OUT, FOLD, tb), lambda i: (0, 0, i)),
        ),
        compiler_params=pltpu.CompilerParams(
            dimension_semantics=("parallel",),    # batch tiles shard across TCs
            vmem_limit_bytes=VMEM_LIMIT_BYTES,
        ),
        cost_estimate=pl.CostEstimate(
            flops=2 * b_pad * N_IN * N_OUT,
            transcendentals=0,
            bytes_accessed=(N_IN + N_OUT) * b_pad * 4
            + (N_IN * N_OUT + N_OUT) * 4,
        ),
    )(w_f, b_f, x_fold)

    # Free unfold back to [3, b_pad]; padded columns hold b_f (nonzero), so the
    # result is always sliced here and never consumed at padded width.
    return out_fold.reshape(N_OUT, b_pad)[:, :B]


def _fuse_params(w1, b1, w2, b2):
    # Exact algebraic fusion of fc2(fc(x)) -- no nonlinearity between layers.
    w_f = w2.astype(jnp.float32) @ w1.astype(jnp.float32)                 # [3, 4]
    b_f = w2.astype(jnp.float32) @ b1.astype(jnp.float32) \
        + b2.astype(jnp.float32)                                          # [3]
    return w_f, b_f


@jax.jit
def net_forward_feature_major(x_fm, w1, b1, w2, b2):
    """Fast path for layout-aware producers: x_fm [4, B] -> y [3, B].

    Skips the batch-major <-> feature-major relayout passes entirely.
    """
    w_f, b_f = _fuse_params(w1, b1, w2, b2)
    return _fused_affine_pallas(x_fm, w_f, b_f)


@jax.jit
def _net_forward_pallas(x, w1, b1, w2, b2):
    w_f, b_f = _fuse_params(w1, b1, w2, b2)
    # One jitted relayout pass in (cast + transpose + pad + fold fuse under
    # jit) and a single transpose out.
    return _fused_affine_pallas(x.T, w_f, b_f).T


@jax.jit
def _net_forward_xla(x, w1, b1, w2, b2):
    w_f, b_f = _fuse_params(w1, b1, w2, b2)
    return x.astype(jnp.float32) @ w_f.T + b_f


def net_forward(x, w1, b1, w2, b2, *, min_pallas_batch=MIN_PALLAS_BATCH):
    """Equivalent of Net.forward: fc2(fc(x)).  x: [B, 4] -> [B, 3]."""
    if x.shape[0] < min_pallas_batch:
        # Small batches: relayout + kernel launch overhead dominates; let XLA
        # fuse the (already algebraically fused) affine into one pass.
        return _net_forward_xla(x, w1, b1, w2, b2)
    return _net_forward_pallas(x, w1, b1, w2, b2)


def init_params(key):
    """Deterministic init mimicking nn.Linear's U(-1/sqrt(fan_in), 1/sqrt(fan_in))."""
    k1, k2, k3, k4 = jax.random.split(key, 4)
    bound1 = 1.0 / jnp.sqrt(4.0)
    bound2 = 1.0 / jnp.sqrt(32.0)
    w1 = jax.random.uniform(k1, (32, 4), jnp.float32, -bound1, bound1)
    b1 = jax.random.uniform(k2, (32,), jnp.float32, -bound1, bound1)
    w2 = jax.random.uniform(k3, (3, 32), jnp.float32, -bound2, bound2)
    b2 = jax.random.uniform(k4, (3,), jnp.float32, -bound2, bound2)
    return w1, b1, w2, b2


def _reference(x, w1, b1, w2, b2):
    # Unfused two-layer reference (matches torch's fc2(fc(x)) up to f32 rounding).
    return (x @ w1.T + b1) @ w2.T + b2


if __name__ == "__main__":
    key = jax.random.PRNGKey(0)
    k_x, k_p = jax.random.split(key)
    w1, b1, w2, b2 = init_params(k_p)

    # Primary check: force the Pallas path at a small batch (full 8x128 fold,
    # single grid step).
    B = 2048
    x = jax.random.normal(k_x, (B, N_IN), jnp.float32)
    out = jax.block_until_ready(
        net_forward(x, w1, b1, w2, b2, min_pallas_batch=0))
    ref = _reference(x, w1, b1, w2, b2)
    assert out.shape == (B, N_OUT)
    assert jnp.allclose(out, ref, atol=1e-5, rtol=1e-5)

    # Feature-major fast path (no relayout passes).
    out_fm = jax.block_until_ready(
        net_forward_feature_major(x.T, w1, b1, w2, b2))
    assert out_fm.shape == (N_OUT, B)
    assert jnp.allclose(out_fm.T, ref, atol=1e-5, rtol=1e-5)

    # Ragged batch through the Pallas padding path.
    x_odd = jax.random.normal(jax.random.PRNGKey(1), (777, N_IN), jnp.float32)
    out_odd = jax.block_until_ready(
        net_forward(x_odd, w1, b1, w2, b2, min_pallas_batch=0))
    assert out_odd.shape == (777, N_OUT)
    assert jnp.allclose(out_odd, _reference(x_odd, w1, b1, w2, b2),
                        atol=1e-5, rtol=1e-5)

    # Small-batch fallback (plain XLA path).
    x_small = jax.random.normal(jax.random.PRNGKey(2), (8, N_IN), jnp.float32)
    out_small = jax.block_until_ready(net_forward(x_small, w1, b1, w2, b2))
    assert out_small.shape == (8, N_OUT)
    assert jnp.allclose(out_small, _reference(x_small, w1, b1, w2, b2),
                        atol=1e-5, rtol=1e-5)

    print("KERNEL_OK")
</pallas_src>

<mosaic_0001>
module attributes {stable_mosaic.version = 11 : i64} {
  func.func @fused_affine_kernel(%arg0: i32, %arg1: memref<3x4xf32, #tpu.memory_space<smem>>, %arg2: memref<3xf32, #tpu.memory_space<smem>>, %arg3: memref<4x8x256xf32, #tpu.memory_space<vmem>>, %arg4: memref<3x8x256xf32, #tpu.memory_space<vmem>>) attributes {dimension_semantics = [#tpu.dimension_semantics<parallel>], iteration_bounds = array<i64: 1>, scalar_prefetch = 0 : i64, scratch_operands = 0 : i64, tpu.core_type = #tpu.core_type<tc>, window_params = [{transform_indices = @transform_0, window_bounds = array<i64: 3, 4>}, {transform_indices = @transform_1, window_bounds = array<i64: 3>}, {transform_indices = @transform_2, window_bounds = array<i64: 4, 8, 256>}, {transform_indices = @transform_3, window_bounds = array<i64: 3, 8, 256>}]} {
    %c0 = arith.constant 0 : index
    %c0_0 = arith.constant 0 : index
    %c0_1 = arith.constant 0 : index
    %0 = vector.load %arg3[%c0, %c0_0, %c0_1] : memref<4x8x256xf32, #tpu.memory_space<vmem>>, vector<1x8x256xf32>
    %1 = vector.shape_cast %0 : vector<1x8x256xf32> to vector<8x256xf32>
    %c1 = arith.constant 1 : index
    %c0_2 = arith.constant 0 : index
    %c0_3 = arith.constant 0 : index
    %2 = vector.load %arg3[%c1, %c0_2, %c0_3] : memref<4x8x256xf32, #tpu.memory_space<vmem>>, vector<1x8x256xf32>
    %3 = vector.shape_cast %2 : vector<1x8x256xf32> to vector<8x256xf32>
    %c2 = arith.constant 2 : index
    %c0_4 = arith.constant 0 : index
    %c0_5 = arith.constant 0 : index
    %4 = vector.load %arg3[%c2, %c0_4, %c0_5] : memref<4x8x256xf32, #tpu.memory_space<vmem>>, vector<1x8x256xf32>
    %5 = vector.shape_cast %4 : vector<1x8x256xf32> to vector<8x256xf32>
    %c3 = arith.constant 3 : index
    %c0_6 = arith.constant 0 : index
    %c0_7 = arith.constant 0 : index
    %6 = vector.load %arg3[%c3, %c0_6, %c0_7] : memref<4x8x256xf32, #tpu.memory_space<vmem>>, vector<1x8x256xf32>
    %7 = vector.shape_cast %6 : vector<1x8x256xf32> to vector<8x256xf32>
    %c0_8 = arith.constant 0 : index
    %c0_9 = arith.constant 0 : index
    %8 = memref.load %arg1[%c0_8, %c0_9] : memref<3x4xf32, #tpu.memory_space<smem>>
    %9 = vector.broadcast %8 : f32 to vector<8x256xf32>
    %10 = arith.mulf %1, %9 : vector<8x256xf32>
    %c0_10 = arith.constant 0 : index
    %11 = memref.load %arg2[%c0_10] : memref<3xf32, #tpu.memory_space<smem>>
    %12 = vector.broadcast %11 : f32 to vector<8x256xf32>
    %13 = arith.addf %10, %12 : vector<8x256xf32>
    %c0_11 = arith.constant 0 : index
    %c1_12 = arith.constant 1 : index
    %14 = memref.load %arg1[%c0_11, %c1_12] : memref<3x4xf32, #tpu.memory_space<smem>>
    %15 = vector.broadcast %14 : f32 to vector<8x256xf32>
    %16 = arith.mulf %3, %15 : vector<8x256xf32>
    %17 = arith.addf %13, %16 : vector<8x256xf32>
    %c0_13 = arith.constant 0 : index
    %c2_14 = arith.constant 2 : index
    %18 = memref.load %arg1[%c0_13, %c2_14] : memref<3x4xf32, #tpu.memory_space<smem>>
    %19 = vector.broadcast %18 : f32 to vector<8x256xf32>
    %20 = arith.mulf %5, %19 : vector<8x256xf32>
    %21 = arith.addf %17, %20 : vector<8x256xf32>
    %c0_15 = arith.constant 0 : index
    %c3_16 = arith.constant 3 : index
    %22 = memref.load %arg1[%c0_15, %c3_16] : memref<3x4xf32, #tpu.memory_space<smem>>
    %23 = vector.broadcast %22 : f32 to vector<8x256xf32>
    %24 = arith.mulf %7, %23 : vector<8x256xf32>
    %25 = arith.addf %21, %24 : vector<8x256xf32>
    %c0_17 = arith.constant 0 : index
    %c0_18 = arith.constant 0 : index
    %c0_19 = arith.constant 0 : index
    %26 = vector.load %arg4[%c0_17, %c0_18, %c0_19] : memref<3x8x256xf32, #tpu.memory_space<vmem>>, vector<1x8x256xf32>
    %27 = vector.shape_cast %26 : vector<1x8x256xf32> to vector<8x256xf32>
    %28 = vector.shape_cast %25 : vector<8x256xf32> to vector<1x8x256xf32>
    tpu.vector_store %arg4[%c0_17, %c0_18, %c0_19], %28 {strides = array<i32>} : memref<3x8x256xf32, #tpu.memory_space<vmem>>, vector<1x8x256xf32>,
    %c1_20 = arith.constant 1 : index
    %c0_21 = arith.constant 0 : index
    %29 = memref.load %arg1[%c1_20, %c0_21] : memref<3x4xf32, #tpu.memory_space<smem>>
    %30 = vector.broadcast %29 : f32 to vector<8x256xf32>
    %31 = arith.mulf %1, %30 : vector<8x256xf32>
    %c1_22 = arith.constant 1 : index
    %32 = memref.load %arg2[%c1_22] : memref<3xf32, #tpu.memory_space<smem>>
    %33 = vector.broadcast %32 : f32 to vector<8x256xf32>
    %34 = arith.addf %31, %33 : vector<8x256xf32>
    %c1_23 = arith.constant 1 : index
    %c1_24 = arith.constant 1 : index
    %35 = memref.load %arg1[%c1_23, %c1_24] : memref<3x4xf32, #tpu.memory_space<smem>>
    %36 = vector.broadcast %35 : f32 to vector<8x256xf32>
    %37 = arith.mulf %3, %36 : vector<8x256xf32>
    %38 = arith.addf %34, %37 : vector<8x256xf32>
    %c1_25 = arith.constant 1 : index
    %c2_26 = arith.constant 2 : index
    %39 = memref.load %arg1[%c1_25, %c2_26] : memref<3x4xf32, #tpu.memory_space<smem>>
    %40 = vector.broadcast %39 : f32 to vector<8x256xf32>
    %41 = arith.mulf %5, %40 : vector<8x256xf32>
    %42 = arith.addf %38, %41 : vector<8x256xf32>
    %c1_27 = arith.constant 1 : index
    %c3_28 = arith.constant 3 : index
    %43 = memref.load %arg1[%c1_27, %c3_28] : memref<3x4xf32, #tpu.memory_space<smem>>
    %44 = vector.broadcast %43 : f32 to vector<8x256xf32>
    %45 = arith.mulf %7, %44 : vector<8x256xf32>
    %46 = arith.addf %42, %45 : vector<8x256xf32>
    %c1_29 = arith.constant 1 : index
    %c0_30 = arith.constant 0 : index
    %c0_31 = arith.constant 0 : index
    %47 = vector.load %arg4[%c1_29, %c0_30, %c0_31] : memref<3x8x256xf32, #tpu.memory_space<vmem>>, vector<1x8x256xf32>
    %48 = vector.shape_cast %47 : vector<1x8x256xf32> to vector<8x256xf32>
    %49 = vector.shape_cast %46 : vector<8x256xf32> to vector<1x8x256xf32>
    tpu.vector_store %arg4[%c1_29, %c0_30, %c0_31], %49 {strides = array<i32>} : memref<3x8x256xf32, #tpu.memory_space<vmem>>, vector<1x8x256xf32>,
    %c2_32 = arith.constant 2 : index
    %c0_33 = arith.constant 0 : index
    %50 = memref.load %arg1[%c2_32, %c0_33] : memref<3x4xf32, #tpu.memory_space<smem>>
    %51 = vector.broadcast %50 : f32 to vector<8x256xf32>
    %52 = arith.mulf %1, %51 : vector<8x256xf32>
    %c2_34 = arith.constant 2 : index
    %53 = memref.load %arg2[%c2_34] : memref<3xf32, #tpu.memory_space<smem>>
    %54 = vector.broadcast %53 : f32 to vector<8x256xf32>
    %55 = arith.addf %52, %54 : vector<8x256xf32>
    %c2_35 = arith.constant 2 : index
    %c1_36 = arith.constant 1 : index
    %56 = memref.load %arg1[%c2_35, %c1_36] : memref<3x4xf32, #tpu.memory_space<smem>>
    %57 = vector.broadcast %56 : f32 to vector<8x256xf32>
    %58 = arith.mulf %3, %57 : vector<8x256xf32>
    %59 = arith.addf %55, %58 : vector<8x256xf32>
    %c2_37 = arith.constant 2 : index
    %c2_38 = arith.constant 2 : index
    %60 = memref.load %arg1[%c2_37, %c2_38] : memref<3x4xf32, #tpu.memory_space<smem>>
    %61 = vector.broadcast %60 : f32 to vector<8x256xf32>
    %62 = arith.mulf %5, %61 : vector<8x256xf32>
    %63 = arith.addf %59, %62 : vector<8x256xf32>
    %c2_39 = arith.constant 2 : index
    %c3_40 = arith.constant 3 : index
    %64 = memref.load %arg1[%c2_39, %c3_40] : memref<3x4xf32, #tpu.memory_space<smem>>
    %65 = vector.broadcast %64 : f32 to vector<8x256xf32>
    %66 = arith.mulf %7, %65 : vector<8x256xf32>
    %67 = arith.addf %63, %66 : vector<8x256xf32>
    %c2_41 = arith.constant 2 : index
    %c0_42 = arith.constant 0 : index
    %c0_43 = arith.constant 0 : index
    %68 = vector.load %arg4[%c2_41, %c0_42, %c0_43] : memref<3x8x256xf32, #tpu.memory_space<vmem>>, vector<1x8x256xf32>
    %69 = vector.shape_cast %68 : vector<1x8x256xf32> to vector<8x256xf32>
    %70 = vector.shape_cast %67 : vector<8x256xf32> to vector<1x8x256xf32>
    tpu.vector_store %arg4[%c2_41, %c0_42, %c0_43], %70 {strides = array<i32>} : memref<3x8x256xf32, #tpu.memory_space<vmem>>, vector<1x8x256xf32>,
    return
  }
  func.func @transform_0(%arg0: i32) -> (i32, i32) {
    %c0_i32 = arith.constant 0 : i32
    %c0_i32_0 = arith.constant 0 : i32
    %c0_i32_1 = arith.constant 0 : i32
    return %c0_i32, %c0_i32_0 : i32, i32
  }
  func.func @transform_1(%arg0: i32) -> i32 {
    %c0_i32 = arith.constant 0 : i32
    %c0_i32_0 = arith.constant 0 : i32
    return %c0_i32 : i32
  }
  func.func @transform_2(%arg0: i32) -> (i32, i32, i32) {
    %c0_i32 = arith.constant 0 : i32
    %c0_i32_0 = arith.constant 0 : i32
    %c0_i32_1 = arith.constant 0 : i32
    return %c0_i32, %c0_i32_0, %arg0 : i32, i32, i32
  }
  func.func @transform_3(%arg0: i32) -> (i32, i32, i32) {
    %c0_i32 = arith.constant 0 : i32
    %c0_i32_0 = arith.constant 0 : i32
    %c0_i32_1 = arith.constant 0 : i32
    return %c0_i32, %c0_i32_0, %arg0 : i32, i32, i32
  }
}

</mosaic_0001>

<llo_original>
// kernel: _net_forward_pallas.1
$region0: #{_net_forward_pallas.1}
  #allocation0 [shape = 'u32[]', space=smem, size = 0x4, offset = 0x4, fixed_abs, tag = 'smem constant byte address 0x4 - core index']
  #allocation1 [shape = 'u32[72,128]{1,0:T(1,128)}', space=vmem, size = 0x9000, scoped, tag = 'internal scratch']
  %s0 = inlined_call_operand.vmem [shape: f32[3,4], index: 0, kind: input, shape index: {}]
  %s1 = inlined_call_operand.vmem [shape: f32[3], index: 1, kind: input, shape index: {}]
  %s2 = inlined_call_operand.vmem [shape: f32[4,8,256], index: 2, kind: input, shape index: {}]
  %s3 = inlined_call_operand.vmem [shape: f32[3,8,256], index: 3, kind: output, shape index: {}]
  %s4 = sld [smem:[#allocation0]]
  $region30: #{_net_forward_pallas.1} parent=0
    _
  %s6 = ssub.s32 1, %s4
  %s7 = scalar_select 0, %s6, %s4
  $region1: #{_net_forward_pallas.1} parent=0
    #allocation2 [shape = 'u8[2048]{0}', space=smem, size = 0x800, scoped, tag = 'input window, operand 0, single buffered']
    #allocation3 [shape = 's32[1]{0}', space=sflag, size = 0x4, scoped, tag = 'scoped memory for _net_forward_pallas.1']
    #allocation4 [shape = 'u8[512]{0}', space=smem, size = 0x200, scoped, tag = 'input window, operand 1, single buffered']
    #allocation5 [shape = 's32[1]{0}', space=sflag, size = 0x4, scoped, tag = 'scoped memory for _net_forward_pallas.1']
    %8 = vsyncpa [#allocation3], 0
    %9 = vsyncpa [#allocation5], 0
    // Predicated region
    $region2: #{_net_forward_pallas.1} parent=1 // pred_check
      _
    $region3: #{_net_forward_pallas.1} parent=1 // pred_check_branch
      %11 = sbr.rel (0) target = $region5
    $region4: #{_net_forward_pallas.1} parent=1 // pred_region
      %13 = vsyncadd [#allocation3], 0
      %s15 = sshll.u32 %s0, 4
      %s16 = int_to_ptr.vmem [resolvable:$true] %s15
      %18 = dma.vmem_to_smem %s16, 64, [#allocation2], [#allocation3]
    $region5: #{_net_forward_pallas.1} parent=1 // pred_fallthru
      _
    // Predicated region
    $region6: #{_net_forward_pallas.1} parent=1 // pred_check
      _
    $region7: #{_net_forward_pallas.1} parent=1 // pred_check_branch
      %20 = sbr.rel (0) target = $region9
    $region8: #{_net_forward_pallas.1} parent=1 // pred_region
      %22 = vsyncadd [#allocation5], 0
      %s24 = sshll.u32 %s1, 4
      %s25 = int_to_ptr.vmem [resolvable:$true] %s24
      %27 = dma.vmem_to_smem %s25, 16, [#allocation4], [#allocation5]
    $region9: #{_net_forward_pallas.1} parent=1 // pred_fallthru
      _
    // Predicated region
    $region10: #{_net_forward_pallas.1} parent=1 // pred_check
      _
    $region11: #{_net_forward_pallas.1} parent=1 // pred_check_branch
      %29 = sbr.rel (0) target = $region13
    $region12: #{_net_forward_pallas.1} parent=1 // pred_region
      _
    $region13: #{_net_forward_pallas.1} parent=1 // pred_fallthru
      _
    // Predicated region
    $region14: #{_net_forward_pallas.1} parent=1 // pred_check
      _
    $region15: #{_net_forward_pallas.1} parent=1 // pred_check_branch
      %31 = sbr.rel (0) target = $region17
    $region16: #{_net_forward_pallas.1} parent=1 // pred_region
      %33 = dma.done [#allocation3], 64
    $region17: #{_net_forward_pallas.1} parent=1 // pred_fallthru
      _
    // Predicated region
    $region18: #{_net_forward_pallas.1} parent=1 // pred_check
      _
    $region19: #{_net_forward_pallas.1} parent=1 // pred_check_branch
      %35 = sbr.rel (0) target = $region21
    $region20: #{_net_forward_pallas.1} parent=1 // pred_region
      %37 = dma.done [#allocation5], 16
    $region21: #{_net_forward_pallas.1} parent=1 // pred_fallthru
      _
    %38 = sfence
    %v39 = vld [vmem:[%s2] sm:$0xff]
    %v40 = vld [vmem:[%s2 + $0x8] sm:$0xff]
    %s41 = scalar_lea.vmem %s2, 16
    %v42 = vld [vmem:[%s41] sm:$0xff]
    %v43 = vld [vmem:[%s41 + $0x8] sm:$0xff]
    %s44 = scalar_lea.vmem %s2, 32
    %v45 = vld [vmem:[%s44] sm:$0xff]
    %v46 = vld [vmem:[%s44 + $0x8] sm:$0xff]
    %s47 = scalar_lea.vmem %s2, 48
    %v48 = vld [vmem:[%s47] sm:$0xff]
    %v49 = vld [vmem:[%s47 + $0x8] sm:$0xff]
    %s50 = sld [smem:[#allocation2]]
    %v51 = vstv %s50
    %v52 = vmul.f32 %v39, %v51
    %v53 = vmul.f32 %v40, %v51
    %s54 = sld [smem:[#allocation4]]
    %v55 = vstv %s54
    %v56 = vadd.f32 %v52, %v55
    %v57 = vadd.f32 %v53, %v55
    %s58 = sld [smem:[#allocation2 + $0x1]]
    %v59 = vstv %s58
    %v60 = vmul.f32 %v42, %v59
    %v61 = vmul.f32 %v43, %v59
    %v62 = vadd.f32 %v56, %v60
    %v63 = vadd.f32 %v57, %v61
    %s64 = sld [smem:[#allocation2 + $0x2]]
    %v65 = vstv %s64
    %v66 = vmul.f32 %v45, %v65
    %v67 = vmul.f32 %v46, %v65
    %v68 = vadd.f32 %v62, %v66
    %v69 = vadd.f32 %v63, %v67
    %s70 = sld [smem:[#allocation2 + $0x3]]
    %v71 = vstv %s70
    %v72 = vmul.f32 %v48, %v71
    %v73 = vmul.f32 %v49, %v71
    %v74 = vadd.f32 %v68, %v72
    %v75 = vadd.f32 %v69, %v73
    %76 = vst [vmem:[%s3] sm:$0xff] %v74
    %77 = vst [vmem:[%s3 + $0x8] sm:$0xff] %v75
    %s78 = sld [smem:[#allocation2 + $0x80]]
    %v79 = vstv %s78
    %v80 = vmul.f32 %v39, %v79
    %v81 = vmul.f32 %v40, %v79
    %s82 = sld [smem:[#allocation4 + $0x1]]
    %v83 = vstv %s82
    %v84 = vadd.f32 %v80, %v83
    %v85 = vadd.f32 %v81, %v83
    %s86 = sld [smem:[#allocation2 + $0x81]]
    %v87 = vstv %s86
    %v88 = vmul.f32 %v42, %v87
    %v89 = vmul.f32 %v43, %v87
    %v90 = vadd.f32 %v84, %v88
    %v91 = vadd.f32 %v85, %v89
    %s92 = sld [smem:[#allocation2 + $0x82]]
    %v93 = vstv %s92
    %v94 = vmul.f32 %v45, %v93
    %v95 = vmul.f32 %v46, %v93
    %v96 = vadd.f32 %v90, %v94
    %v97 = vadd.f32 %v91, %v95
    %s98 = sld [smem:[#allocation2 + $0x83]]
    %v99 = vstv %s98
    %v100 = vmul.f32 %v48, %v99
    %v101 = vmul.f32 %v49, %v99
    %v102 = vadd.f32 %v96, %v100
    %v103 = vadd.f32 %v97, %v101
    %s104 = scalar_lea.vmem %s3, 16
    %105 = vst [vmem:[%s104] sm:$0xff] %v102
    %106 = vst [vmem:[%s104 + $0x8] sm:$0xff] %v103
    %s107 = sld [smem:[#allocation2 + $0x100]]
    %v108 = vstv %s107
    %v109 = vmul.f32 %v39, %v108
    %v110 = vmul.f32 %v40, %v108
    %s111 = sld [smem:[#allocation4 + $0x2]]
    %v112 = vstv %s111
    %v113 = vadd.f32 %v109, %v112
    %v114 = vadd.f32 %v110, %v112
    %s115 = sld [smem:[#allocation2 + $0x101]]
    %v116 = vstv %s115
    %v117 = vmul.f32 %v42, %v116
    %v118 = vmul.f32 %v43, %v116
    %v119 = vadd.f32 %v113, %v117
    %v120 = vadd.f32 %v114, %v118
    %s121 = sld [smem:[#allocation2 + $0x102]]
    %v122 = vstv %s121
    %v123 = vmul.f32 %v45, %v122
    %v124 = vmul.f32 %v46, %v122
    %v125 = vadd.f32 %v119, %v123
    %v126 = vadd.f32 %v120, %v124
    %s127 = sld [smem:[#allocation2 + $0x103]]
    %v128 = vstv %s127
    %v129 = vmul.f32 %v48, %v128
    %v130 = vmul.f32 %v49, %v128
    %v131 = vadd.f32 %v125, %v129
    %v132 = vadd.f32 %v126, %v130
    %s133 = scalar_lea.vmem %s3, 32
    %134 = vst [vmem:[%s133] sm:$0xff] %v131
    %135 = vst [vmem:[%s133 + $0x8] sm:$0xff] %v132
    // Predicated region
    $region22: #{_net_forward_pallas.1} parent=1 // pred_check
      _
    $region23: #{_net_forward_pallas.1} parent=1 // pred_check_branch
      %137 = sbr.rel (0) target = $region25
    $region24: #{_net_forward_pallas.1} parent=1 // pred_region
      _
    $region25: #{_net_forward_pallas.1} parent=1 // pred_fallthru
      _
    // Predicated region
    $region26: #{_net_forward_pallas.1} parent=1 // pred_check
      _
    $region27: #{_net_forward_pallas.1} parent=1 // pred_check_branch
      %139 = sbr.rel (0) target = $region29
    $region28: #{_net_forward_pallas.1} parent=1 // pred_region
      _
    $region29: #{_net_forward_pallas.1} parent=1 // pred_fallthru
      _
    %140 = vsyncpa [#allocation3], 1
    %141 = vsyncpa [#allocation5], 1

</llo_original>
